<compile_context>
chip_gen: v6e
topology: v6e:2x2x1
jax: 0.10.0
libtpu: 0.0.40
codegen_flags: <defaults>
</compile_context>

<pallas_src>
import functools

import jax
import jax.numpy as jnp
from jax.experimental import pallas as pl
from jax.experimental.pallas import tpu as pltpu


def _max_margin_kernel(conf_ref, sii_ref, out_ref, acc_ref, *,
                       margin, n_rows, n_cols, tile_n, tile_m,
                       mask_rows, mask_cols):
    i = pl.program_id(0)   # row-tile index ("parallel")
    j = pl.program_id(1)   # col-tile index ("arbitrary" reduction)

    @pl.when(j == 0)
    def _init():
        acc_ref[...] = jnp.zeros_like(acc_ref)

    conf = conf_ref[...].astype(jnp.float32)            # (tile_n, tile_m)
    b = jnp.float32(margin) - sii_ref[...]              # (tile_n, 1)
    hinge = jnp.maximum(conf + b, 0.0)                  # element-wise VPU work

    # Ragged-edge masking (only traced in when N or M is not tile-aligned).
    if mask_rows or mask_cols:
        valid = None
        if mask_rows:
            row_ids = (jax.lax.broadcasted_iota(jnp.int32, (tile_n, tile_m), 0)
                       + i * tile_n)
            valid = row_ids < n_rows
        if mask_cols:
            col_ids = (jax.lax.broadcasted_iota(jnp.int32, (tile_n, tile_m), 1)
                       + j * tile_m)
            cvalid = col_ids < n_cols
            valid = cvalid if valid is None else jnp.logical_and(valid, cvalid)
        hinge = jnp.where(valid, hinge, 0.0)

    # Sublane reduce (XLU) into a tiny per-lane partial; no per-element RMW.
    acc_ref[...] += jnp.sum(hinge, axis=0, keepdims=True)

    @pl.when(j == pl.num_programs(1) - 1)
    def _finalize():
        total = jnp.sum(acc_ref[...])
        out_ref[...] = jnp.full(out_ref.shape, total, dtype=jnp.float32)


def _round_up(x, k):
    return ((x + k - 1) // k) * k


def _round_down(x, k):
    return (x // k) * k


def _scoped_vmem_budget():
    try:
        phys = int(pltpu.get_tpu_info().vmem_capacity_bytes)
    except Exception:
        phys = 64 * 1024 * 1024  # conservative (v7x per-TC physical)
    return min(phys // 2, 64 * 1024 * 1024)


_MAX_FULL_ROW_COLS = 2048   # above this, tile the column (lane) axis


def max_margin_ranking_loss(conf_matrix, gt_idx, margin=1.0,
                            tile_n=None, tile_m=None):
    """conf_matrix: (N, M) float32/bfloat16; gt_idx: (N,) int. Returns scalar f32."""
    n, m = conf_matrix.shape
    assert gt_idx.shape == (n,)
    gt = gt_idx.astype(jnp.int32)

    # O(N) gather in the wrapper; kernel body stays pure streaming VPU work.
    sii = jnp.take_along_axis(conf_matrix, gt[:, None], axis=1).astype(jnp.float32)

    itemsize = jnp.dtype(conf_matrix.dtype).itemsize
    row_align = (8 * 4) // max(itemsize, 1)           # f32: 8, bf16: 16, int8: 32

    scoped_vmem = _scoped_vmem_budget()
    tile_cap_bytes = max(scoped_vmem // 5, 256 * 1024)  # per double-buffered conf tile

    # Column tile: whole row when narrow, else a multiple of 128 lanes.
    if tile_m is None:
        tile_m = m if m <= _MAX_FULL_ROW_COLS else _MAX_FULL_ROW_COLS
    if tile_m != m:
        tile_m = max(128, _round_down(int(tile_m), 128))
        tile_m = min(tile_m, _round_up(m, 128))

    # Row tile: dtype-aware, as tall as the per-generation VMEM budget allows.
    if tile_n is None:
        rows_cap = max(row_align, tile_cap_bytes // (itemsize * max(tile_m, 1)))
        tile_n = min(_round_down(rows_cap, row_align), _round_up(n, row_align))
        tile_n = max(tile_n, row_align)
    else:
        tile_n = _round_up(max(int(tile_n), row_align), row_align)

    num_row_tiles = pl.cdiv(n, tile_n)
    num_col_tiles = pl.cdiv(m, tile_m)
    mask_rows = (n % tile_n) != 0
    mask_cols = (m % tile_m) != 0

    kernel = functools.partial(
        _max_margin_kernel, margin=float(margin), n_rows=n, n_cols=m,
        tile_n=tile_n, tile_m=tile_m, mask_rows=mask_rows, mask_cols=mask_cols)

    cost = pl.CostEstimate(
        flops=3 * n * m,
        transcendentals=0,
        bytes_accessed=n * m * itemsize + n * 4 + num_row_tiles * 8 * 128 * 4)

    partials = pl.pallas_call(
        kernel,
        out_shape=jax.ShapeDtypeStruct((num_row_tiles, 8, 128), jnp.float32),
        grid_spec=pltpu.PrefetchScalarGridSpec(
            num_scalar_prefetch=0,
            grid=(num_row_tiles, num_col_tiles),
            in_specs=[
                # conf streamed in its input dtype (bf16 halves HBM traffic),
                # upcast inside the kernel. Default double buffering is ample
                # at multi-MiB tiles; deepen via pl.Buffered only if a profile
                # shows exposed DMA waits at tiny shapes.
                pl.BlockSpec((tile_n, tile_m), lambda i, j: (i, j)),
                pl.BlockSpec((tile_n, 1), lambda i, j: (i, 0)),
            ],
            out_specs=pl.BlockSpec((1, 8, 128), lambda i, j: (i, 0, 0)),
            scratch_shapes=[pltpu.VMEM((1, tile_m), jnp.float32)],
        ),
        compiler_params=pltpu.CompilerParams(
            dimension_semantics=("parallel", "arbitrary"),
            vmem_limit_bytes=scoped_vmem,
        ),
        cost_estimate=cost,
    )(conf_matrix, sii)

    # Tiny per-row-tile partials; final sum + normalization in the wrapper.
    return jnp.sum(partials[:, 0, 0]) / jnp.float32(n)


def _reference(conf_matrix, gt_idx, margin=1.0):
    n = conf_matrix.shape[0]
    c = conf_matrix.astype(jnp.float32)
    sii = jnp.take_along_axis(c, gt_idx.astype(jnp.int32)[:, None], axis=1)
    return jnp.sum(jnp.maximum(margin - (sii - c), 0.0)) / n


if __name__ == "__main__":
    key = jax.random.PRNGKey(0)
    k1, k2, k3, k4, k5, k6 = jax.random.split(key, 6)

    # 1) f32, forced tile_n=8 -> 4 row tiles on the "parallel" axis.
    N, M = 32, 16
    conf = jax.random.normal(k1, (N, M), dtype=jnp.float32)
    gt = jax.random.randint(k2, (N,), 0, M, dtype=jnp.int32)
    loss = jax.block_until_ready(max_margin_ranking_loss(conf, gt, margin=1.0, tile_n=8))
    ref = _reference(conf, gt, margin=1.0)
    assert jnp.allclose(loss, ref, atol=1e-4, rtol=1e-5), (loss, ref)

    # 2) f32, ragged rows (N=20, tile_n=8): last row tile masked in-kernel, no conf pad.
    N2, M2 = 20, 16
    conf2 = jax.random.normal(k3, (N2, M2), dtype=jnp.float32)
    gt2 = jax.random.randint(k4, (N2,), 0, M2, dtype=jnp.int32)
    loss2 = jax.block_until_ready(max_margin_ranking_loss(conf2, gt2, margin=1.0, tile_n=8))
    ref2 = _reference(conf2, gt2, margin=1.0)
    assert jnp.allclose(loss2, ref2, atol=1e-4, rtol=1e-5), (loss2, ref2)

    # 3) bf16 streamed as-is, upcast in-kernel (row_align=16 -> 2 row tiles).
    conf_bf16 = conf.astype(jnp.bfloat16)
    loss3 = jax.block_until_ready(
        max_margin_ranking_loss(conf_bf16, gt, margin=1.0, tile_n=16))
    ref3 = _reference(conf_bf16.astype(jnp.float32), gt, margin=1.0)
    assert jnp.allclose(loss3, ref3, atol=2e-2, rtol=2e-2), (loss3, ref3)

    # 4) Column tiling + ragged columns (M=320, tile_m=128 -> 3 col tiles, last masked).
    N4, M4 = 24, 320
    conf4 = jax.random.normal(k5, (N4, M4), dtype=jnp.float32)
    gt4 = jax.random.randint(k6, (N4,), 0, M4, dtype=jnp.int32)
    loss4 = jax.block_until_ready(
        max_margin_ranking_loss(conf4, gt4, margin=1.0, tile_n=8, tile_m=128))
    ref4 = _reference(conf4, gt4, margin=1.0)
    assert jnp.allclose(loss4, ref4, atol=1e-3, rtol=1e-4), (loss4, ref4)

    print("KERNEL_OK")
</pallas_src>

<mosaic_0001>
module attributes {stable_mosaic.version = 11 : i64} {
  func.func @_max_margin_kernel(%arg0: i32, %arg1: i32, %arg2: memref<8x16xf32, #tpu.memory_space<vmem>>, %arg3: memref<8x1xf32, #tpu.memory_space<vmem>>, %arg4: memref<1x8x128xf32, #tpu.memory_space<vmem>>, %arg5: memref<1x16xf32, #tpu.memory_space<vmem>>) attributes {dimension_semantics = [#tpu.dimension_semantics<parallel>, #tpu.dimension_semantics<arbitrary>], iteration_bounds = array<i64: 4, 1>, scalar_prefetch = 0 : i64, scratch_operands = 1 : i64, tpu.core_type = #tpu.core_type<tc>, window_params = [{transform_indices = @transform_0, window_bounds = array<i64: 8, 16>}, {transform_indices = @transform_1, window_bounds = array<i64: 8, 1>}, {transform_indices = @transform_2, window_bounds = array<i64: 1, 8, 128>}]} {
    %c0_i32 = arith.constant 0 : i32
    %0 = arith.cmpi eq, %arg1, %c0_i32 : i32
    %1 = arith.extui %0 : i1 to i32
    %c0_i32_0 = arith.constant 0 : i32
    %2 = arith.cmpi ne, %1, %c0_i32_0 : i32
    scf.if %2 {
      %cst_12 = arith.constant 0.000000e+00 : f32
      %19 = vector.broadcast %cst_12 : f32 to vector<1x16xf32>
      %c0_13 = arith.constant 0 : index
      %c0_14 = arith.constant 0 : index
      %20 = vector.load %arg5[%c0_13, %c0_14] : memref<1x16xf32, #tpu.memory_space<vmem>>, vector<1x16xf32>
      tpu.vector_store %arg5[%c0_13, %c0_14], %19 {strides = array<i32>} : memref<1x16xf32, #tpu.memory_space<vmem>>, vector<1x16xf32>,
    } else {
    }
    %c0 = arith.constant 0 : index
    %c0_1 = arith.constant 0 : index
    %3 = vector.load %arg2[%c0, %c0_1] : memref<8x16xf32, #tpu.memory_space<vmem>>, vector<8x16xf32>
    %c0_2 = arith.constant 0 : index
    %c0_3 = arith.constant 0 : index
    %4 = vector.load %arg3[%c0_2, %c0_3] : memref<8x1xf32, #tpu.memory_space<vmem>>, vector<8x1xf32>
    %cst = arith.constant 1.000000e+00 : f32
    %5 = vector.broadcast %cst : f32 to vector<8x1xf32>
    %6 = arith.subf %5, %4 : vector<8x1xf32>
    %7 = vector.broadcast %6 : vector<8x1xf32> to vector<8x16xf32>
    %8 = arith.addf %3, %7 : vector<8x16xf32>
    %cst_4 = arith.constant 0.000000e+00 : f32
    %9 = vector.broadcast %cst_4 : f32 to vector<8x16xf32>
    %10 = arith.maximumf %8, %9 : vector<8x16xf32>
    %c0_5 = arith.constant 0 : index
    %c0_6 = arith.constant 0 : index
    %11 = vector.load %arg5[%c0_5, %c0_6] : memref<1x16xf32, #tpu.memory_space<vmem>>, vector<1x16xf32>
    %cst_7 = arith.constant dense<0.000000e+00> : vector<16xf32>
    %12 = vector.multi_reduction <add>, %10, %cst_7 [0] : vector<8x16xf32> to vector<16xf32>
    %13 = vector.shape_cast %12 : vector<16xf32> to vector<1x16xf32>
    %14 = arith.addf %11, %13 : vector<1x16xf32>
    %c0_8 = arith.constant 0 : index
    %c0_9 = arith.constant 0 : index
    %15 = vector.load %arg5[%c0_8, %c0_9] : memref<1x16xf32, #tpu.memory_space<vmem>>, vector<1x16xf32>
    tpu.vector_store %arg5[%c0_8, %c0_9], %14 {strides = array<i32>} : memref<1x16xf32, #tpu.memory_space<vmem>>, vector<1x16xf32>,
    %c0_i32_10 = arith.constant 0 : i32
    %16 = arith.cmpi eq, %arg1, %c0_i32_10 : i32
    %17 = arith.extui %16 : i1 to i32
    %c0_i32_11 = arith.constant 0 : i32
    %18 = arith.cmpi ne, %17, %c0_i32_11 : i32
    scf.if %18 {
      %c0_12 = arith.constant 0 : index
      %c0_13 = arith.constant 0 : index
      %19 = vector.load %arg5[%c0_12, %c0_13] : memref<1x16xf32, #tpu.memory_space<vmem>>, vector<1x16xf32>
      %20 = vector.shape_cast %19 : vector<1x16xf32> to vector<1x1x16xf32>
      %cst_14 = arith.constant dense<0.000000e+00> : vector<1xf32>
      %21 = vector.multi_reduction <add>, %20, %cst_14 [1, 2] : vector<1x1x16xf32> to vector<1xf32>
      %22 = vector.shape_cast %21 : vector<1xf32> to vector<1x1x1xf32>
      %23 = vector.extract %22[0, 0, 0] : f32 from vector<1x1x1xf32>
      %24 = vector.broadcast %23 : f32 to vector<1x8x128xf32>
      %c0_15 = arith.constant 0 : index
      %c0_16 = arith.constant 0 : index
      %c0_17 = arith.constant 0 : index
      %25 = vector.load %arg4[%c0_15, %c0_16, %c0_17] : memref<1x8x128xf32, #tpu.memory_space<vmem>>, vector<1x8x128xf32>
      tpu.vector_store %arg4[%c0_15, %c0_16, %c0_17], %24 {strides = array<i32>} : memref<1x8x128xf32, #tpu.memory_space<vmem>>, vector<1x8x128xf32>,
    } else {
    }
    return
  }
  func.func @transform_0(%arg0: i32, %arg1: i32) -> (i32, i32) {
    %c0_i32 = arith.constant 0 : i32
    return %arg0, %arg1 : i32, i32
  }
  func.func @transform_1(%arg0: i32, %arg1: i32) -> (i32, i32) {
    %c0_i32 = arith.constant 0 : i32
    %c0_i32_0 = arith.constant 0 : i32
    return %arg0, %c0_i32 : i32, i32
  }
  func.func @transform_2(%arg0: i32, %arg1: i32) -> (i32, i32, i32) {
    %c0_i32 = arith.constant 0 : i32
    %c0_i32_0 = arith.constant 0 : i32
    %c0_i32_1 = arith.constant 0 : i32
    return %arg0, %c0_i32, %c0_i32_0 : i32, i32, i32
  }
}

</mosaic_0001>

<llo_original>
// kernel: tpu_custom_call.1
$region0: #{tpu_custom_call.1}
  #allocation0 [shape = 'u32[]', space=smem, size = 0x4, offset = 0x4, fixed_abs, tag = 'smem constant byte address 0x4 - core index']
  #allocation1 [shape = 'u32[144,128]{1,0:T(1,128)}', space=vmem, size = 0x12000, scoped, tag = 'internal scratch']
  #allocation2 [shape = 'f32[1,16]{1,0:T(1,128)}', space=vmem, size = 0x200, scoped, tag = 'scratch operand']
  %s0 = inlined_call_operand.vmem [shape: f32[32,16], index: 0, kind: input, shape index: {}]
  %s1 = inlined_call_operand.vmem [shape: f32[32,1], index: 1, kind: input, shape index: {}]
  %s2 = inlined_call_operand.hbm [shape: f32[4,8,128], index: 2, kind: output, shape index: {}]
  %s3 = sld [smem:[#allocation0]]
  $region49: #{tpu_custom_call.1} parent=0
    _
  %s5 = ssub.s32 1, %s3
  %s6 = scalar_select 0, %s5, %s3
  $region1: #{tpu_custom_call.1} parent=0
    #allocation3 [shape = 'u8[8192]{0}', space=vmem, size = 0x2000, scoped, tag = 'output window, operand 0']
    #allocation4 [shape = 's32[2]{0}', space=sflag, size = 0x8, scoped, tag = 'scoped memory for tpu_custom_call.1']
    %7 = vsyncpa [#allocation4], 0
    %s8 = scalar_lea.sflag [#allocation4], 1
    %9 = vsyncpa %s8, 0
    loop: start=0, step=1, limit=6
    $region2: #{tpu_custom_call.1} parent=1 // loop_pre_header
      _
    $region3: #{tpu_custom_call.1} parent=1 // loop_header
      %s11 = sphi 0, %s15
      %p12 = scmp.ge.s32.totalorder %s11, 6
      %s18 = sphi 0, %s30
      %s19 = sphi 0, %s26
      %s20 = sphi 0, %s18
      %s21 = sphi 0, %s19
      %s22 = sphi 0, %s20
      %s23 = sphi 0, %s21
      %s35 = sphi 0, %s37
      %s38 = sphi 0, %s35
      %s39 = sphi 0, %s38
      %s55 = sphi 0, %s39
      %s61 = sphi 0, %s63
      %s64 = sphi 0, %s61
      %s65 = sphi 0, %s64
      %s81 = sphi 0, %s65
      %s87 = sphi 0, %s89
      %s90 = sphi 0, %s87
      %s91 = sphi 0, %s90
      %s107 = sphi 0, %s91
    $region4: #{tpu_custom_call.1} parent=1 // loop_header_branch
      %14 = sbr.rel (%p12) target = $region8
    $region5: #{tpu_custom_call.1} parent=1 // loop_body
      %s16 = ssub.s32 %s11, 1
      %s17 = ssub.s32 %s11, 2
      %s24 = sadd.s32 1, %s19
      %p25 = scmp.ge.s32.totalorder %s24, 1
      %s26 = scalar_select %p25, 0, %s24
      %s27 = sadd.s32 1, %s18
      %s28 = scalar_select %p25, %s27, %s18
      %p29 = scmp.ge.s32.totalorder %s28, 4
      %s30 = scalar_select %p29, 0, %s28
      %s31 = ssub.s32 %s18, %s30
      %s32 = ssub.s32 %s19, %s26
      %s33 = sor.u32 %s31, %s32
      %p34 = scmp.eq.s32.totalorder %s33, 0
      %s36 = sadd.s32 %s35, 1
      %s37 = scalar_select %p34, %s35, %s36
      %p40 = pneg %p34
      %p41 = scmp.eq.s32.totalorder %s11, 3
      %p42 = por %p40, %p41
      %p43 = scmp.ne.s32.totalorder %s35, %s38
      %p44 = scmp.eq.s32.totalorder %s11, 0
      %p45 = por %p43, %p44
      %p46 = scmp.ne.s32.totalorder %s35, %s38
      %p47 = scmp.eq.s32.totalorder %s16, 3
      %p48 = por %p46, %p47
      %p49 = scmp.ne.s32.totalorder %s38, %s39
      %p50 = scmp.eq.s32.totalorder %s16, 0
      %p51 = por %p49, %p50
      %p52 = scmp.ne.s32.totalorder %s38, %s39
      %p53 = scmp.eq.s32.totalorder %s17, 3
      %p54 = por %p52, %p53
      %p56 = scmp.ne.s32.totalorder %s39, %s55
      %p57 = scmp.eq.s32.totalorder %s17, 0
      %p58 = por %p56, %p57
      %s59 = ssub.s32 %s18, %s30
      %p60 = scmp.eq.s32.totalorder %s59, 0
      %s62 = sadd.s32 %s61, 1
      %s63 = scalar_select %p60, %s61, %s62
      %p66 = pneg %p60
      %p67 = scmp.eq.s32.totalorder %s11, 3
      %p68 = por %p66, %p67
      %p69 = scmp.ne.s32.totalorder %s61, %s64
      %p70 = scmp.eq.s32.totalorder %s11, 0
      %p71 = por %p69, %p70
      %p72 = scmp.ne.s32.totalorder %s61, %s64
      %p73 = scmp.eq.s32.totalorder %s16, 3
      %p74 = por %p72, %p73
      %p75 = scmp.ne.s32.totalorder %s64, %s65
      %p76 = scmp.eq.s32.totalorder %s16, 0
      %p77 = por %p75, %p76
      %p78 = scmp.ne.s32.totalorder %s64, %s65
      %p79 = scmp.eq.s32.totalorder %s17, 3
      %p80 = por %p78, %p79
      %p82 = scmp.ne.s32.totalorder %s65, %s81
      %p83 = scmp.eq.s32.totalorder %s17, 0
      %p84 = por %p82, %p83
      %s85 = ssub.s32 %s18, %s30
      %p86 = scmp.eq.s32.totalorder %s85, 0
      %s88 = sadd.s32 %s87, 1
      %s89 = scalar_select %p86, %s87, %s88
      %p92 = pneg %p86
      %p93 = scmp.eq.s32.totalorder %s11, 3
      %p94 = por %p92, %p93
      %p95 = scmp.ne.s32.totalorder %s87, %s90
      %p96 = scmp.eq.s32.totalorder %s11, 0
      %p97 = por %p95, %p96
      %p98 = scmp.ne.s32.totalorder %s87, %s90
      %p99 = scmp.eq.s32.totalorder %s16, 3
      %p100 = por %p98, %p99
      %p101 = scmp.ne.s32.totalorder %s90, %s91
      %p102 = scmp.eq.s32.totalorder %s16, 0
      %p103 = por %p101, %p102
      %p104 = scmp.ne.s32.totalorder %s90, %s91
      %p105 = scmp.eq.s32.totalorder %s17, 3
      %p106 = por %p104, %p105
      %p108 = scmp.ne.s32.totalorder %s91, %s107
      %p109 = scmp.eq.s32.totalorder %s17, 0
      %p110 = por %p108, %p109
      %p111 = scmp.le.s32.totalorder 1, %s11
      %p112 = scmp.lt.s32.totalorder %s11, 5
      %p113 = pnand %p111, %p112
      %p114 = pneg %p113
      // Predicated region
      $region9: #{tpu_custom_call.1} parent=5 // pred_check
        _
      $region10: #{tpu_custom_call.1} parent=5 // pred_check_branch
        %116 = sbr.rel (%p113) target = $region12
      $region11: #{tpu_custom_call.1} parent=5 // pred_region
        %s117 = ssub.s32 %s11, 1
      $region12: #{tpu_custom_call.1} parent=5 // pred_fallthru
        _
      %p118 = scmp.lt.s32.totalorder %s11, 4
      // Predicated region
      $region13: #{tpu_custom_call.1} parent=5 // pred_check
        %p119 = pneg %p118
      $region14: #{tpu_custom_call.1} parent=5 // pred_check_branch
        %121 = sbr.rel (%p119) target = $region16
      $region15: #{tpu_custom_call.1} parent=5 // pred_region
        // Predicated region
        $region17: #{tpu_custom_call.1} parent=15 // pred_check
          %p122 = pneg %p45
        $region18: #{tpu_custom_call.1} parent=15 // pred_check_branch
          %124 = sbr.rel (%p122) target = $region20
        $region19: #{tpu_custom_call.1} parent=15 // pred_region
          %p125 = scmp.lt.s32.totalorder %s18, 3
          %s126 = scalar_select %p125, %s18, 3
          %p127 = scmp.lt.s32.totalorder %s19, 0
          %s128 = scalar_select %p127, %s19, 0
          %s129 = sadd.s32 %s128, %s126
          %s130 = smul.addr %s129, 8
          %s131 = scalar_lea.vmem %s0, %s130
        $region20: #{tpu_custom_call.1} parent=15 // pred_fallthru
          _
        // Predicated region
        $region21: #{tpu_custom_call.1} parent=15 // pred_check
          %p132 = pneg %p71
        $region22: #{tpu_custom_call.1} parent=15 // pred_check_branch
          %134 = sbr.rel (%p132) target = $region24
        $region23: #{tpu_custom_call.1} parent=15 // pred_region
          %p135 = scmp.lt.s32.totalorder %s18, 3
          %s136 = scalar_select %p135, %s18, 3
          %s137 = smul.addr %s136, 8
          %s138 = scalar_lea.vmem %s1, %s137
        $region24: #{tpu_custom_call.1} parent=15 // pred_fallthru
          _
      $region16: #{tpu_custom_call.1} parent=5 // pred_fallthru
        _
      %p139 = scmp.le.s32.totalorder 1, %s11
      %p140 = scmp.lt.s32.totalorder %s11, 5
      %p141 = pnand %p139, %p140
      %p142 = pneg %p141
      // Predicated region
      $region25: #{tpu_custom_call.1} parent=5 // pred_check
        _
      $region26: #{tpu_custom_call.1} parent=5 // pred_check_branch
        %144 = sbr.rel (%p141) target = $region28
      $region27: #{tpu_custom_call.1} parent=5 // pred_region
        %s145 = ssub.s32 %s11, 1
        %p146 = scmp.lt.s32.totalorder %s20, 3
        %s147 = scalar_select %p146, %s20, 3
        %p148 = scmp.lt.s32.totalorder %s21, 0
        %s149 = scalar_select %p148, %s21, 0
        %s150 = sadd.s32 %s149, %s147
        %s151 = smul.addr %s150, 8
        %s152 = scalar_lea.vmem %s0, %s151
        %p153 = pneg %p51
        %p154 = pneg %p48
        %p155 = scmp.lt.s32.totalorder %s20, 3
        %s156 = scalar_select %p155, %s20, 3
        %s157 = smul.addr %s156, 8
        %s158 = scalar_lea.vmem %s1, %s157
        %p159 = pneg %p77
        %p160 = pneg %p74
        %p161 = pneg %p103
        %p162 = pneg %p100
        %s163 = sand.u32 %s90, 1
        %s164 = scalar_lea.sflag [#allocation4], %s163
        %s165 = sand.u32 %s90, 1
        %s166 = smul.addr %s165, 8
        %s167 = scalar_lea.vmem [#allocation3], %s166
        %p168 = scmp.lt.s32.totalorder %s20, 3
        %s169 = scalar_select %p168, %s20, 3
        %p170 = scmp.lt.s32.totalorder %s21, 0
        %s171 = scalar_select %p170, %s21, 0
        %s172 = sadd.s32 %s171, %s169
        %s173 = smul.addr %s172, 8
        %s174 = scalar_lea.vmem %s0, %s173
        %p175 = scmp.lt.s32.totalorder %s20, 3
        %s176 = scalar_select %p175, %s20, 3
        %s177 = smul.addr %s176, 8
        %s178 = scalar_lea.vmem %s1, %s177
        %p179 = scmp.eq.s32.totalorder %s21, 0
        // Predicated region
        $region29: #{tpu_custom_call.1} parent=27 // pred_check
          %p180 = pneg %p179
        $region30: #{tpu_custom_call.1} parent=27 // pred_check_branch
          %182 = sbr.rel (%p180) target = $region32
        $region31: #{tpu_custom_call.1} parent=27 // pred_region
          %vm183 = vcmask 122880
          %184 = vst.msk [vmem:[#allocation2] sm:$0x1] %vm183, 0.0
        $region32: #{tpu_custom_call.1} parent=27 // pred_fallthru
          _
        %v185 = vld [vmem:[%s174] sm:$0xff]
        %v186 = vld [vmem:[%s178] sm:$0xff]
        %v187 = vsub.f32 1.0, %v186
        %189 = vset.pattern.permute.xlu0 0
        %190 = vperm.xlu0 %189, %v187
        %v191 = vpop.permute.xlu0 %190
        %v193 = vadd.f32 %v185, %v191
        %v194 = vmax.f32 %v193, 0.0
        %v195 = vld [vmem:[#allocation2] sm:$0x1]
        %vm196 = vcmask 130048
        %v197 = vsel %vm196, %v194, 0.0
        %v198 = vrot.slane %v197, 4
        %v199 = vadd.f32 %v197, %v198
        %v200 = vrot.slane %v199, 2
        %v201 = vadd.f32 %v199, %v200
        %v202 = vrot.slane %v201, 1
        %v203 = vadd.f32 %v201, %v202
        %v204 = vadd.f32 %v195, %v203
        %vm205 = vcmask 122880
        %206 = vst.msk [vmem:[#allocation2] sm:$0x1] %vm205, %v204
        // Predicated region
        $region33: #{tpu_custom_call.1} parent=27 // pred_check
          %p207 = pneg %p179
        $region34: #{tpu_custom_call.1} parent=27 // pred_check_branch
          %209 = sbr.rel (%p207) target = $region36
        $region35: #{tpu_custom_call.1} parent=27 // pred_region
          %v210 = vld [vmem:[#allocation2] sm:$0x1]
          %v211 = vsel %vm205, %v210, 0.0
          %212 = vadd.xlane.f32.xlu0 %v211
          %v213 = vpop.xlane.xlu0 %212
          %v214 = vrot.slane %v213, 4
          %v215 = vadd.f32 %v213, %v214
          %v216 = vrot.slane %v215, 2
          %v217 = vadd.f32 %v215, %v216
          %v218 = vrot.slane %v217, 1
          %v219 = vadd.f32 %v217, %v218
          %s220 = vtos %v219
          %v221 = vstv %s220
          %222 = vst [vmem:[%s167] sm:$0xff] %v221
        $region36: #{tpu_custom_call.1} parent=27 // pred_fallthru
          _
        %s223 = sand.u32 %s90, 1
        %s224 = scalar_lea.sflag [#allocation4], %s223
        %s225 = sand.u32 %s90, 1
        %s226 = smul.addr %s225, 8
        %s227 = scalar_lea.vmem [#allocation3], %s226
        // Predicated region
        $region37: #{tpu_custom_call.1} parent=27 // pred_check
          %p228 = pneg %p100
        $region38: #{tpu_custom_call.1} parent=27 // pred_check_branch
          %230 = sbr.rel (%p228) target = $region40
        $region39: #{tpu_custom_call.1} parent=27 // pred_region
          %s232 = ssub.s32 128, 128
          %233 = vsyncadd %s224, %s232
          %s234 = smul.addr %s20, 128
          %s235 = scalar_lea.hbm %s2, %s234
          %s237 = sshll.u32 %s227, 4
          %s238 = int_to_ptr.vmem [resolvable:$true] %s237
          %240 = dma.vmem_to_hbm [thread:$0]  %s238, 128, %s235, %s224
        $region40: #{tpu_custom_call.1} parent=27 // pred_fallthru
          _
      $region28: #{tpu_custom_call.1} parent=5 // pred_fallthru
        _
      %p241 = scmp.le.s32.totalorder 2, %s11
      // Predicated region
      $region41: #{tpu_custom_call.1} parent=5 // pred_check
        %p242 = pneg %p241
      $region42: #{tpu_custom_call.1} parent=5 // pred_check_branch
        %244 = sbr.rel (%p242) target = $region44
      $region43: #{tpu_custom_call.1} parent=5 // pred_region
        %s245 = ssub.s32 %s11, 2
        // Predicated region
        $region45: #{tpu_custom_call.1} parent=43 // pred_check
          %p246 = pneg %p106
        $region46: #{tpu_custom_call.1} parent=43 // pred_check_branch
          %248 = sbr.rel (%p246) target = $region48
        $region47: #{tpu_custom_call.1} parent=43 // pred_region
          %s249 = sand.u32 %s91, 1
          %s250 = scalar_lea.sflag [#allocation4], %s249
          %s251 = sand.u32 %s91, 1
          %s252 = smul.addr %s251, 8
          %s253 = scalar_lea.vmem [#allocation3], %s252
          %254 = dma.done %s250, 128
        $region48: #{tpu_custom_call.1} parent=43 // pred_fallthru
          _
      $region44: #{tpu_custom_call.1} parent=5 // pred_fallthru
        _
    $region6: #{tpu_custom_call.1} parent=1 // loop_footer
      %s15 = sadd.s32 1, %s11
    $region7: #{tpu_custom_call.1} parent=1 // loop_footer_branch
      %10 = sbr.rel target = $region3
    $region8: #{tpu_custom_call.1} parent=1 // loop_exit
      _
    %255 = vsyncpa [#allocation4], 1
    %s256 = scalar_lea.sflag [#allocation4], 1
    %257 = vsyncpa %s256, 1

</llo_original>
